<compile_context>
chip_gen: v6e
topology: v6e:2x2x1
jax: 0.10.0
libtpu: 0.0.40
codegen_flags: <defaults>
</compile_context>

<pallas_src>
import functools

import jax
import jax.numpy as jnp
from jax.experimental import pallas as pl
from jax.experimental.pallas import tpu as pltpu

# ---- hyperparameters (hp.* in the original code) ---------------------------
HP_SUPPLEMENT_TRANSFORM_FEATURES = 32   # hp.supplement_transform_features
HP_POOLING_OUTSIZE = 8                  # hp.Pooling_outsize

_TARGET_STEP_BYTES = 4 << 20   # aim for ~4 MiB of VMEM working set per grid step
_MIN_GRID_STEPS = 8            # keep v7x's two TensorCores (and pipeline) busy


# ---------------------------------------------------------------------------
# Kernels
# ---------------------------------------------------------------------------
def _vice_kernel_ncl(x_ref, w1_ref, b1_ref, w2_ref, b2_ref, o_ref, *,
                     lp, bins_per_tile):
    """NCL-native fused path.

    x_ref : (b_blk, Cin, l_tile)   f32, L in lanes (lane-dense)
    w1_ref: (T, Cin)   b1_ref: (T, 1)
    w2_ref: (Cout, T)  b2_ref: (Cout, 1)
    o_ref : (b_blk, 1, Cout, bins_per_tile)
    """
    b = x_ref.shape[0]
    t, cin = w1_ref.shape
    cout = w2_ref.shape[0]

    x = x_ref[...]                                               # (b, Cin, l)

    # Conv1d(k=1) #1 + ReLU :  h[b, t, l] = sum_c w1[t, c] * x[b, c, l]
    w1b = jnp.broadcast_to(w1_ref[...], (b, t, cin))
    h = jax.lax.dot_general(w1b, x, (((2,), (1,)), ((0,), (0,))),
                            preferred_element_type=jnp.float32)  # (b, T, l)
    h = jnp.maximum(h + b1_ref[...][None], 0.0)

    # Conv1d(k=1) #2 :  y[b, o, l] = sum_t w2[o, t] * h[b, t, l]
    w2b = jnp.broadcast_to(w2_ref[...], (b, cout, t))
    y = jax.lax.dot_general(w2b, h, (((2,), (1,)), ((0,), (0,))),
                            preferred_element_type=jnp.float32)  # (b, Cout, l)
    y = y + b2_ref[...][None]

    # AdaptiveMaxPool1d over the (uniform, width-lp) bins covered by this tile:
    # reduce over the lane axis per bin, then one dense store of the block.
    pooled = [jnp.max(y[:, :, i * lp:(i + 1) * lp], axis=-1, keepdims=True)
              for i in range(bins_per_tile)]                    # each (b, Cout, 1)
    pooled = pooled[0] if bins_per_tile == 1 else jnp.concatenate(pooled, axis=-1)
    o_ref[...] = pooled[:, None, :, :]                          # (b, 1, Cout, bins)


def _vice_kernel_fallback(x_ref, w1_ref, b1_ref, w2_ref, b2_ref, o_ref, *, L, P):
    """Fallback for L % P != 0 (non-uniform PyTorch pooling bins): one sample
    per grid step, NCL-native, exact AdaptiveMaxPool1d bin edges, single dense
    (Cout, P) store.

    TODO(synk): tile L for extremely long irregular sequences.
    """
    x = x_ref[0]                                                 # (Cin, L)
    h = jnp.dot(w1_ref[...], x, preferred_element_type=jnp.float32)
    h = jnp.maximum(h + b1_ref[...], 0.0)
    y = jnp.dot(w2_ref[...], h, preferred_element_type=jnp.float32) + b2_ref[...]
    cols = []
    for i in range(P):                    # exact PyTorch AdaptiveMaxPool1d edges
        s = (i * L) // P
        e = -(-((i + 1) * L) // P)
        cols.append(jnp.max(y[:, s:e], axis=-1, keepdims=True))
    o_ref[...] = jnp.concatenate(cols, axis=-1)[None]            # (1, Cout, P)


# ---------------------------------------------------------------------------
# Tiling heuristics
# ---------------------------------------------------------------------------
def _pick_vmem_limit():
    """Chip-aware scoped-VMEM limit: ~96 MiB on v5e/v6e (128 MiB physical),
    32 MiB on v7x (64 MiB physical per TensorCore)."""
    try:
        cap = int(pltpu.get_tpu_info().vmem_capacity_bytes)
    except Exception:
        return 32 * 1024 * 1024            # safe default on any generation
    if cap >= 128 * 1024 * 1024:
        return 96 * 1024 * 1024
    return 32 * 1024 * 1024


def _divisors(n):
    return [d for d in range(1, n + 1) if n % d == 0]


def _pick_b_blk(n, n_l_tiles, per_b_bytes, budget):
    """Largest divisor of N whose per-step VMEM footprint fits the budget,
    stopping once per-step work reaches ~_TARGET_STEP_BYTES or growing further
    would leave fewer than _MIN_GRID_STEPS grid steps (v7x dual-TC)."""
    best = 1
    for d in _divisors(n):
        if d * per_b_bytes > budget:
            break
        if d > 1:
            enough_work = best * per_b_bytes >= _TARGET_STEP_BYTES
            starves_grid = (n // d) * n_l_tiles < _MIN_GRID_STEPS <= n * n_l_tiles
            if enough_work or starves_grid:
                break
        best = d
        if best * per_b_bytes >= _TARGET_STEP_BYTES:
            break
    return best


def _pick_tiling(N, Cin, L, T, Cout, P, vmem_limit):
    """Returns (b_blk, n_l_tiles, l_tile, bins_per_tile) or None (-> fallback)."""
    if N <= 0 or L <= 0 or P <= 0 or L % P != 0:
        return None
    budget = vmem_limit // 2               # headroom: weights, out blocks, scratch
    cin_pad = -(-Cin // 8) * 8             # Cin pads to 8 sublanes in VMEM

    def per_b_bytes(lt):                   # f32: x tile (x2 buffers) + h + y
        return 4 * lt * (2 * cin_pad + T + Cout)

    cands = []
    for n in range(1, P + 1):              # l_tile must cover whole bins
        if P % n:
            continue
        lt = L // n
        if n > 1 and lt % 128:             # lane-dim constraint on the x block
            continue
        cands.append((n, lt))
    chosen = None
    for n, lt in cands:                    # ascending n == descending l_tile
        if per_b_bytes(lt) <= budget:
            chosen = (n, lt)
            break
    if chosen is None:
        chosen = cands[-1]                 # smallest legal tile; may still be big
    n_l, l_tile = chosen
    b_blk = _pick_b_blk(N, n_l, per_b_bytes(l_tile), budget)
    return b_blk, n_l, l_tile, P // n_l


# ---------------------------------------------------------------------------
# Wrapper
# ---------------------------------------------------------------------------
def vice_audiomodel_forward(x_ncl, w1, b1, w2, b2,
                            pooling_outsize=HP_POOLING_OUTSIZE):
    """x_ncl: (N, nfeature, L) float32 -> (N, 64, pooling_outsize) float32.

    w1: (T, nfeature), b1: (T,)   -- Conv1d(nfeature, T, kernel_size=1)
    w2: (64, T),       b2: (64,)  -- Conv1d(T, 64,       kernel_size=1)
    """
    N, Cin, L = x_ncl.shape
    T = w1.shape[0]
    Cout = w2.shape[0]
    P = pooling_outsize

    x = x_ncl.astype(jnp.float32)                       # stays NCL: no transpose
    w1f = w1.reshape(T, Cin).astype(jnp.float32)
    w2f = w2.reshape(Cout, T).astype(jnp.float32)
    b1c = b1.reshape(T, 1).astype(jnp.float32)          # column bias, adds along L
    b2c = b2.reshape(Cout, 1).astype(jnp.float32)

    vmem_limit = _pick_vmem_limit()
    cost = pl.CostEstimate(
        flops=2 * N * L * (Cin * T + T * Cout),
        transcendentals=0,
        bytes_accessed=4 * (N * Cin * L + Cin * T + T + T * Cout + Cout
                            + N * Cout * P))

    tiling = _pick_tiling(N, Cin, L, T, Cout, P, vmem_limit)

    if tiling is not None:
        b_blk, n_l, l_tile, bins_per_tile = tiling
        lp = L // P
        kernel = functools.partial(_vice_kernel_ncl, lp=lp,
                                   bins_per_tile=bins_per_tile)
        out4 = pl.pallas_call(
            kernel,
            out_shape=jax.ShapeDtypeStruct((N, n_l, Cout, bins_per_tile),
                                           jnp.float32),
            grid=(N // b_blk, n_l),
            in_specs=[
                pl.BlockSpec((b_blk, Cin, l_tile), lambda bi, li: (bi, 0, li)),
                pl.BlockSpec((T, Cin), lambda bi, li: (0, 0)),
                pl.BlockSpec((T, 1), lambda bi, li: (0, 0)),
                pl.BlockSpec((Cout, T), lambda bi, li: (0, 0)),
                pl.BlockSpec((Cout, 1), lambda bi, li: (0, 0)),
            ],
            out_specs=pl.BlockSpec((b_blk, 1, Cout, bins_per_tile),
                                   lambda bi, li: (bi, li, 0, 0)),
            compiler_params=pltpu.CompilerParams(
                dimension_semantics=("parallel", "parallel"),
                vmem_limit_bytes=vmem_limit),
            cost_estimate=cost,
        )(x, w1f, b1c, w2f, b2c)
        # (N, n_l, Cout, bins) -> (N, Cout, P): tiny reassembly outside the kernel.
        out = jnp.transpose(out4, (0, 2, 1, 3)).reshape(N, Cout, P)
    else:
        kernel = functools.partial(_vice_kernel_fallback, L=L, P=P)
        out = pl.pallas_call(
            kernel,
            out_shape=jax.ShapeDtypeStruct((N, Cout, P), jnp.float32),
            grid=(N,),
            in_specs=[
                pl.BlockSpec((1, Cin, L), lambda bi: (bi, 0, 0)),
                pl.BlockSpec((T, Cin), lambda bi: (0, 0)),
                pl.BlockSpec((T, 1), lambda bi: (0, 0)),
                pl.BlockSpec((Cout, T), lambda bi: (0, 0)),
                pl.BlockSpec((Cout, 1), lambda bi: (0, 0)),
            ],
            out_specs=pl.BlockSpec((1, Cout, P), lambda bi: (bi, 0, 0)),
            compiler_params=pltpu.CompilerParams(
                dimension_semantics=("parallel",),
                vmem_limit_bytes=vmem_limit),
            cost_estimate=cost,
        )(x, w1f, b1c, w2f, b2c)

    return out


# ---------------------------------------------------------------------------
# Pure-JAX reference (mirrors the PyTorch module), for verification
# ---------------------------------------------------------------------------
def _reference_forward(x_ncl, w1, b1, w2, b2, P):
    N, Cin, L = x_ncl.shape
    h = jnp.einsum("ncl,tc->ntl", x_ncl, w1) + b1[None, :, None]
    h = jnp.maximum(h, 0.0)
    y = jnp.einsum("ntl,ot->nol", h, w2) + b2[None, :, None]
    cols = []
    for i in range(P):
        s = (i * L) // P
        e = -(-((i + 1) * L) // P)
        cols.append(jnp.max(y[:, :, s:e], axis=-1))
    return jnp.stack(cols, axis=-1)


if __name__ == "__main__":
    # Small, deterministic example consistent with the module.
    N = 2                # batch
    NFEATURE = 4         # nfeature (input channels of the 1D signal)
    L = 16               # sequence length
    T = HP_SUPPLEMENT_TRANSFORM_FEATURES
    P = HP_POOLING_OUTSIZE

    key = jax.random.PRNGKey(0)
    kx, kw1, kb1, kw2, kb2 = jax.random.split(key, 5)

    x = jax.random.normal(kx, (N, NFEATURE, L), dtype=jnp.float32)
    # Conv1d weights (kernel_size=1): PyTorch shape (out, in, 1) -> store (out, in).
    w1 = jax.random.normal(kw1, (T, NFEATURE), dtype=jnp.float32) * 0.1
    b1 = jax.random.normal(kb1, (T,), dtype=jnp.float32) * 0.1
    w2 = jax.random.normal(kw2, (64, T), dtype=jnp.float32) * 0.1
    b2 = jax.random.normal(kb2, (64,), dtype=jnp.float32) * 0.1

    out = vice_audiomodel_forward(x, w1, b1, w2, b2, P)
    out = jax.block_until_ready(out)

    ref = _reference_forward(x, w1, b1, w2, b2, P)
    assert out.shape == (N, 64, P), out.shape
    assert jnp.allclose(out, ref, atol=1e-4, rtol=1e-4), "mismatch vs reference"

    print("KERNEL_OK")
</pallas_src>

<mosaic_0001>
module attributes {stable_mosaic.version = 11 : i64} {
  func.func @_vice_kernel_ncl(%arg0: i32, %arg1: i32, %arg2: memref<2x4x16xf32, #tpu.memory_space<vmem>>, %arg3: memref<32x4xf32, #tpu.memory_space<vmem>>, %arg4: memref<32x1xf32, #tpu.memory_space<vmem>>, %arg5: memref<64x32xf32, #tpu.memory_space<vmem>>, %arg6: memref<64x1xf32, #tpu.memory_space<vmem>>, %arg7: memref<2x1x64x8xf32, #tpu.memory_space<vmem>>) attributes {dimension_semantics = [#tpu.dimension_semantics<parallel>, #tpu.dimension_semantics<parallel>], iteration_bounds = array<i64: 1, 1>, scalar_prefetch = 0 : i64, scratch_operands = 0 : i64, tpu.core_type = #tpu.core_type<tc>, window_params = [{transform_indices = @transform_0, window_bounds = array<i64: 2, 4, 16>}, {pipeline_mode = #tpu.pipeline_mode<synchronous>, transform_indices = @transform_1, window_bounds = array<i64: 32, 4>}, {pipeline_mode = #tpu.pipeline_mode<synchronous>, transform_indices = @transform_2, window_bounds = array<i64: 32, 1>}, {pipeline_mode = #tpu.pipeline_mode<synchronous>, transform_indices = @transform_3, window_bounds = array<i64: 64, 32>}, {pipeline_mode = #tpu.pipeline_mode<synchronous>, transform_indices = @transform_4, window_bounds = array<i64: 64, 1>}, {transform_indices = @transform_5, window_bounds = array<i64: 2, 1, 64, 8>}]} {
    %c0 = arith.constant 0 : index
    %c0_0 = arith.constant 0 : index
    %c0_1 = arith.constant 0 : index
    %0 = vector.load %arg2[%c0, %c0_0, %c0_1] : memref<2x4x16xf32, #tpu.memory_space<vmem>>, vector<2x4x16xf32>
    %c0_2 = arith.constant 0 : index
    %c0_3 = arith.constant 0 : index
    %1 = vector.load %arg3[%c0_2, %c0_3] : memref<32x4xf32, #tpu.memory_space<vmem>>, vector<32x4xf32>
    %2 = vector.shape_cast %1 : vector<32x4xf32> to vector<1x32x4xf32>
    %3 = vector.broadcast %2 : vector<1x32x4xf32> to vector<2x32x4xf32>
    %cst = arith.constant dense<0.000000e+00> : vector<2x32x16xf32>
    %4 = tpu.matmul %3, %0, %cst {dimension_numbers = #tpu.dot_dimension_numbers<[2], [1], [1], [2], [0, 0, 0, 1, 1, 2], [0], [0]>} : vector<2x32x4xf32>, vector<2x4x16xf32>, vector<2x32x16xf32> -> vector<2x32x16xf32>
    %c0_4 = arith.constant 0 : index
    %c0_5 = arith.constant 0 : index
    %5 = vector.load %arg4[%c0_4, %c0_5] : memref<32x1xf32, #tpu.memory_space<vmem>>, vector<32x1xf32>
    %6 = vector.shape_cast %5 : vector<32x1xf32> to vector<1x32x1xf32>
    %7 = vector.broadcast %6 : vector<1x32x1xf32> to vector<2x32x16xf32>
    %8 = arith.addf %4, %7 : vector<2x32x16xf32>
    %cst_6 = arith.constant 0.000000e+00 : f32
    %9 = vector.broadcast %cst_6 : f32 to vector<2x32x16xf32>
    %10 = arith.maximumf %8, %9 : vector<2x32x16xf32>
    %c0_7 = arith.constant 0 : index
    %c0_8 = arith.constant 0 : index
    %11 = vector.load %arg5[%c0_7, %c0_8] : memref<64x32xf32, #tpu.memory_space<vmem>>, vector<64x32xf32>
    %12 = vector.shape_cast %11 : vector<64x32xf32> to vector<1x64x32xf32>
    %13 = vector.broadcast %12 : vector<1x64x32xf32> to vector<2x64x32xf32>
    %cst_9 = arith.constant dense<0.000000e+00> : vector<2x64x16xf32>
    %14 = tpu.matmul %13, %10, %cst_9 {dimension_numbers = #tpu.dot_dimension_numbers<[2], [1], [1], [2], [0, 0, 0, 1, 1, 2], [0], [0]>} : vector<2x64x32xf32>, vector<2x32x16xf32>, vector<2x64x16xf32> -> vector<2x64x16xf32>
    %c0_10 = arith.constant 0 : index
    %c0_11 = arith.constant 0 : index
    %15 = vector.load %arg6[%c0_10, %c0_11] : memref<64x1xf32, #tpu.memory_space<vmem>>, vector<64x1xf32>
    %16 = vector.shape_cast %15 : vector<64x1xf32> to vector<1x64x1xf32>
    %17 = vector.broadcast %16 : vector<1x64x1xf32> to vector<2x64x16xf32>
    %18 = arith.addf %14, %17 : vector<2x64x16xf32>
    %19 = vector.extract_strided_slice %18 {offsets = [0, 0, 0], sizes = [2, 64, 2], strides = [1, 1, 1]} : vector<2x64x16xf32> to vector<2x64x2xf32>
    %cst_12 = arith.constant dense<0xFF800000> : vector<2x64xf32>
    %20 = vector.multi_reduction <maximumf>, %19, %cst_12 [2] : vector<2x64x2xf32> to vector<2x64xf32>
    %21 = vector.shape_cast %20 : vector<2x64xf32> to vector<2x64x1xf32>
    %22 = vector.extract_strided_slice %18 {offsets = [0, 0, 2], sizes = [2, 64, 2], strides = [1, 1, 1]} : vector<2x64x16xf32> to vector<2x64x2xf32>
    %cst_13 = arith.constant dense<0xFF800000> : vector<2x64xf32>
    %23 = vector.multi_reduction <maximumf>, %22, %cst_13 [2] : vector<2x64x2xf32> to vector<2x64xf32>
    %24 = vector.shape_cast %23 : vector<2x64xf32> to vector<2x64x1xf32>
    %25 = vector.extract_strided_slice %18 {offsets = [0, 0, 4], sizes = [2, 64, 2], strides = [1, 1, 1]} : vector<2x64x16xf32> to vector<2x64x2xf32>
    %cst_14 = arith.constant dense<0xFF800000> : vector<2x64xf32>
    %26 = vector.multi_reduction <maximumf>, %25, %cst_14 [2] : vector<2x64x2xf32> to vector<2x64xf32>
    %27 = vector.shape_cast %26 : vector<2x64xf32> to vector<2x64x1xf32>
    %28 = vector.extract_strided_slice %18 {offsets = [0, 0, 6], sizes = [2, 64, 2], strides = [1, 1, 1]} : vector<2x64x16xf32> to vector<2x64x2xf32>
    %cst_15 = arith.constant dense<0xFF800000> : vector<2x64xf32>
    %29 = vector.multi_reduction <maximumf>, %28, %cst_15 [2] : vector<2x64x2xf32> to vector<2x64xf32>
    %30 = vector.shape_cast %29 : vector<2x64xf32> to vector<2x64x1xf32>
    %31 = vector.extract_strided_slice %18 {offsets = [0, 0, 8], sizes = [2, 64, 2], strides = [1, 1, 1]} : vector<2x64x16xf32> to vector<2x64x2xf32>
    %cst_16 = arith.constant dense<0xFF800000> : vector<2x64xf32>
    %32 = vector.multi_reduction <maximumf>, %31, %cst_16 [2] : vector<2x64x2xf32> to vector<2x64xf32>
    %33 = vector.shape_cast %32 : vector<2x64xf32> to vector<2x64x1xf32>
    %34 = vector.extract_strided_slice %18 {offsets = [0, 0, 10], sizes = [2, 64, 2], strides = [1, 1, 1]} : vector<2x64x16xf32> to vector<2x64x2xf32>
    %cst_17 = arith.constant dense<0xFF800000> : vector<2x64xf32>
    %35 = vector.multi_reduction <maximumf>, %34, %cst_17 [2] : vector<2x64x2xf32> to vector<2x64xf32>
    %36 = vector.shape_cast %35 : vector<2x64xf32> to vector<2x64x1xf32>
    %37 = vector.extract_strided_slice %18 {offsets = [0, 0, 12], sizes = [2, 64, 2], strides = [1, 1, 1]} : vector<2x64x16xf32> to vector<2x64x2xf32>
    %cst_18 = arith.constant dense<0xFF800000> : vector<2x64xf32>
    %38 = vector.multi_reduction <maximumf>, %37, %cst_18 [2] : vector<2x64x2xf32> to vector<2x64xf32>
    %39 = vector.shape_cast %38 : vector<2x64xf32> to vector<2x64x1xf32>
    %40 = vector.extract_strided_slice %18 {offsets = [0, 0, 14], sizes = [2, 64, 2], strides = [1, 1, 1]} : vector<2x64x16xf32> to vector<2x64x2xf32>
    %cst_19 = arith.constant dense<0xFF800000> : vector<2x64xf32>
    %41 = vector.multi_reduction <maximumf>, %40, %cst_19 [2] : vector<2x64x2xf32> to vector<2x64xf32>
    %42 = vector.shape_cast %41 : vector<2x64xf32> to vector<2x64x1xf32>
    %43 = tpu.concatenate %21, %24, %27, %30, %33, %36, %39, %42 in 2 : vector<2x64x1xf32>, vector<2x64x1xf32>, vector<2x64x1xf32>, vector<2x64x1xf32>, vector<2x64x1xf32>, vector<2x64x1xf32>, vector<2x64x1xf32>, vector<2x64x1xf32> -> vector<2x64x8xf32>
    %44 = vector.shape_cast %43 : vector<2x64x8xf32> to vector<2x1x64x8xf32>
    %c0_20 = arith.constant 0 : index
    %c0_21 = arith.constant 0 : index
    %c0_22 = arith.constant 0 : index
    %c0_23 = arith.constant 0 : index
    %45 = vector.load %arg7[%c0_20, %c0_21, %c0_22, %c0_23] : memref<2x1x64x8xf32, #tpu.memory_space<vmem>>, vector<2x1x64x8xf32>
    tpu.vector_store %arg7[%c0_20, %c0_21, %c0_22, %c0_23], %44 {strides = array<i32>} : memref<2x1x64x8xf32, #tpu.memory_space<vmem>>, vector<2x1x64x8xf32>,
    return
  }
  func.func @transform_0(%arg0: i32, %arg1: i32) -> (i32, i32, i32) {
    %c0_i32 = arith.constant 0 : i32
    %c0_i32_0 = arith.constant 0 : i32
    return %arg0, %c0_i32, %arg1 : i32, i32, i32
  }
  func.func @transform_1(%arg0: i32, %arg1: i32) -> (i32, i32) {
    %c0_i32 = arith.constant 0 : i32
    %c0_i32_0 = arith.constant 0 : i32
    %c0_i32_1 = arith.constant 0 : i32
    return %c0_i32, %c0_i32_0 : i32, i32
  }
  func.func @transform_2(%arg0: i32, %arg1: i32) -> (i32, i32) {
    %c0_i32 = arith.constant 0 : i32
    %c0_i32_0 = arith.constant 0 : i32
    %c0_i32_1 = arith.constant 0 : i32
    return %c0_i32, %c0_i32_0 : i32, i32
  }
  func.func @transform_3(%arg0: i32, %arg1: i32) -> (i32, i32) {
    %c0_i32 = arith.constant 0 : i32
    %c0_i32_0 = arith.constant 0 : i32
    %c0_i32_1 = arith.constant 0 : i32
    return %c0_i32, %c0_i32_0 : i32, i32
  }
  func.func @transform_4(%arg0: i32, %arg1: i32) -> (i32, i32) {
    %c0_i32 = arith.constant 0 : i32
    %c0_i32_0 = arith.constant 0 : i32
    %c0_i32_1 = arith.constant 0 : i32
    return %c0_i32, %c0_i32_0 : i32, i32
  }
  func.func @transform_5(%arg0: i32, %arg1: i32) -> (i32, i32, i32, i32) {
    %c0_i32 = arith.constant 0 : i32
    %c0_i32_0 = arith.constant 0 : i32
    %c0_i32_1 = arith.constant 0 : i32
    return %arg0, %arg1, %c0_i32, %c0_i32_0 : i32, i32, i32, i32
  }
}

</mosaic_0001>

<llo_original>
// kernel: tpu_custom_call.1
$region0: #{tpu_custom_call.1}
  #allocation0 [shape = 'u32[]', space=smem, size = 0x4, offset = 0x4, fixed_abs, tag = 'smem constant byte address 0x4 - core index']
  #allocation1 [shape = 'u32[144,128]{1,0:T(1,128)}', space=vmem, size = 0x12000, scoped, tag = 'internal scratch']
  %s0 = inlined_call_operand.vmem [shape: f32[2,4,16], index: 0, kind: input, shape index: {}]
  %s1 = inlined_call_operand.vmem [shape: f32[32,4], index: 1, kind: input, shape index: {}]
  %s2 = inlined_call_operand.vmem [shape: f32[32,1], index: 2, kind: input, shape index: {}]
  %s3 = inlined_call_operand.vmem [shape: f32[64,32], index: 3, kind: input, shape index: {}]
  %s4 = inlined_call_operand.vmem [shape: f32[64,1], index: 4, kind: input, shape index: {}]
  %s5 = inlined_call_operand.vmem [shape: f32[2,1,64,8], index: 5, kind: output, shape index: {}]
  %s6 = sld [smem:[#allocation0]]
  $region30: #{tpu_custom_call.1} parent=0
    _
  %s8 = ssub.s32 1, %s6
  %s9 = scalar_select 0, %s8, %s6
  // Predicated region
  $region2: #{tpu_custom_call.1} parent=0 // pred_check
    _
  $region3: #{tpu_custom_call.1} parent=0 // pred_check_branch
    %11 = sbr.rel (0) target = $region5
  $region4: #{tpu_custom_call.1} parent=0 // pred_region
    _
  $region5: #{tpu_custom_call.1} parent=0 // pred_fallthru
    _
  // Predicated region
  $region6: #{tpu_custom_call.1} parent=0 // pred_check
    _
  $region7: #{tpu_custom_call.1} parent=0 // pred_check_branch
    %13 = sbr.rel (0) target = $region9
  $region8: #{tpu_custom_call.1} parent=0 // pred_region
    _
  $region9: #{tpu_custom_call.1} parent=0 // pred_fallthru
    _
  // Predicated region
  $region10: #{tpu_custom_call.1} parent=0 // pred_check
    _
  $region11: #{tpu_custom_call.1} parent=0 // pred_check_branch
    %15 = sbr.rel (0) target = $region13
  $region12: #{tpu_custom_call.1} parent=0 // pred_region
    _
  $region13: #{tpu_custom_call.1} parent=0 // pred_fallthru
    _
  // Predicated region
  $region14: #{tpu_custom_call.1} parent=0 // pred_check
    _
  $region15: #{tpu_custom_call.1} parent=0 // pred_check_branch
    %17 = sbr.rel (0) target = $region17
  $region16: #{tpu_custom_call.1} parent=0 // pred_region
    _
  $region17: #{tpu_custom_call.1} parent=0 // pred_fallthru
    _
  // Predicated region
  $region18: #{tpu_custom_call.1} parent=0 // pred_check
    _
  $region19: #{tpu_custom_call.1} parent=0 // pred_check_branch
    %19 = sbr.rel (0) target = $region21
  $region20: #{tpu_custom_call.1} parent=0 // pred_region
    _
  $region21: #{tpu_custom_call.1} parent=0 // pred_fallthru
    _
  %v20 = vld [vmem:[%s0] sm:$0xf]
  %v21 = vld [vmem:[%s0 + $0x4] sm:$0xf]
  %v22 = vld [vmem:[%s1] sm:$0xff]
  %v23 = vld [vmem:[%s1 + $0x8] sm:$0xff]
  %v24 = vld [vmem:[%s1 + $0x10] sm:$0xff]
  %v25 = vld [vmem:[%s1 + $0x18] sm:$0xff]
  %v26 = vld [vmem:[%s2] sm:$0xff]
  %v27 = vld [vmem:[%s2 + $0x8] sm:$0xff]
  %v28 = vld [vmem:[%s2 + $0x10] sm:$0xff]
  %v29 = vld [vmem:[%s2 + $0x18] sm:$0xff]
  %31 = vset.pattern.permute.xlu0 0
  %32 = vperm.xlu0 %31, %v26
  %v33 = vpop.permute.xlu0 %32
  %36 = vset.pattern.permute.xlu0 0
  %37 = vperm.xlu0 %36, %v27
  %v38 = vpop.permute.xlu0 %37
  %41 = vset.pattern.permute.xlu0 0
  %42 = vperm.xlu0 %41, %v28
  %v43 = vpop.permute.xlu0 %42
  %46 = vset.pattern.permute.xlu0 0
  %47 = vperm.xlu0 %46, %v29
  %v48 = vpop.permute.xlu0 %47
  %vm50 = vcmask 31744
  %v52 = vsel %vm50, %v22, 0
  %v55 = vsel %vm50, %v23, 0
  %v58 = vsel %vm50, %v24, 0
  %v61 = vsel %vm50, %v25, 0
  %vm63 = vcmask 1043456
  %v65 = vsel %vm63, %v20, 0
  %67 = vmatprep.subr.mxu0 0.0
  %68 = vmatpush1.msra.mxu0 0.0
  %69 = vmatprep.subr.mxu0 0.0
  %70 = vmatpush1.msra.mxu0 0.0
  %71 = vmatprep.subr.mxu0 0.0
  %72 = vmatpush1.msra.mxu0 0.0
  %73 = vmatprep.subr.mxu0 0.0
  %74 = vmatpush1.msra.mxu0 0.0
  %75 = vmatprep.subr.mxu0 0.0
  %76 = vmatpush1.msra.mxu0 0.0
  %77 = vmatprep.subr.mxu0 0.0
  %78 = vmatpush1.msra.mxu0 0.0
  %79 = vmatprep.subr.mxu0 0.0
  %80 = vmatpush1.msra.mxu0 0.0
  %81 = vmatprep.subr.mxu0 0.0
  %82 = vmatpush1.msra.mxu0 0.0
  %83 = vmatprep.subr.mxu0 0.0
  %84 = vmatpush1.msra.mxu0 0.0
  %85 = vmatprep.subr.mxu0 0.0
  %86 = vmatpush1.msra.mxu0 0.0
  %87 = vmatprep.subr.mxu0 0.0
  %88 = vmatpush1.msra.mxu0 0.0
  %89 = vmatprep.subr.mxu0 0.0
  %90 = vmatpush1.msra.mxu0 0.0
  %91 = vmatprep.subr.mxu0 0.0
  %92 = vmatpush1.msra.mxu0 0.0
  %93 = vmatprep.subr.mxu0 0.0
  %94 = vmatpush1.msra.mxu0 0.0
  %95 = vmatprep.subr.mxu0 0.0
  %96 = vmatpush1.msra.mxu0 0.0
  %97 = vmatprep.subr.mxu0 0.0
  %98 = vmatpush1.msra.mxu0 %v65
  %99 = vmatprep.subr.mxu0 0.0
  %100 = vmatpush2.msra.mxu0 0.0
  %101 = vmatprep.subr.mxu0 0.0
  %102 = vmatpush2.msra.mxu0 0.0
  %103 = vmatprep.subr.mxu0 0.0
  %104 = vmatpush2.msra.mxu0 0.0
  %105 = vmatprep.subr.mxu0 0.0
  %106 = vmatpush2.msra.mxu0 0.0
  %107 = vmatprep.subr.mxu0 0.0
  %108 = vmatpush2.msra.mxu0 0.0
  %109 = vmatprep.subr.mxu0 0.0
  %110 = vmatpush2.msra.mxu0 0.0
  %111 = vmatprep.subr.mxu0 0.0
  %112 = vmatpush2.msra.mxu0 0.0
  %113 = vmatprep.subr.mxu0 0.0
  %114 = vmatpush2.msra.mxu0 0.0
  %115 = vmatprep.subr.mxu0 0.0
  %116 = vmatpush2.msra.mxu0 0.0
  %117 = vmatprep.subr.mxu0 0.0
  %118 = vmatpush2.msra.mxu0 0.0
  %119 = vmatprep.subr.mxu0 0.0
  %120 = vmatpush2.msra.mxu0 0.0
  %121 = vmatprep.subr.mxu0 0.0
  %122 = vmatpush2.msra.mxu0 0.0
  %123 = vmatprep.subr.mxu0 0.0
  %124 = vmatpush2.msra.mxu0 0.0
  %125 = vmatprep.subr.mxu0 0.0
  %126 = vmatpush2.msra.mxu0 0.0
  %127 = vmatprep.subr.mxu0 0.0
  %128 = vmatpush2.msra.mxu0 0.0
  %129 = vmatprep.subr.mxu0 0.0
  %130 = vmatpush2.msra.mxu0 0.0
  %131 = vmatprep.mubr.f32.mxu0 0.0
  %132 = vmatmul.mubr.f32.gmra.mxu0 %v52
  %v133 = vpop.f32.mrf.mxu0
  %v134 = vadd.f32 %v33, %v133
  %v135 = vpop.f32.mrf.mxu0
  %136 = vmatprep.mubr.f32.mxu0 0.0
  %137 = vmatmul.mubr.f32.gmra.mxu0 %v55
  %v138 = vpop.f32.mrf.mxu0
  %v139 = vadd.f32 %v38, %v138
  %v140 = vpop.f32.mrf.mxu0
  %141 = vmatprep.mubr.f32.mxu0 0.0
  %142 = vmatmul.mubr.f32.gmra.mxu0 %v58
  %v143 = vpop.f32.mrf.mxu0
  %v144 = vadd.f32 %v43, %v143
  %v145 = vpop.f32.mrf.mxu0
  %146 = vmatprep.mubr.f32.mxu0 0.0
  %147 = vmatmul.mubr.f32.gmra.mxu0 %v61
  %v148 = vpop.f32.mrf.mxu0
  %v149 = vadd.f32 %v48, %v148
  %v150 = vpop.f32.mrf.mxu0
  %151 = vdwg.mxu0
  %v153 = vsel %vm63, %v21, 0
  %155 = vmatprep.subr.mxu0 0.0
  %156 = vmatpush1.msra.mxu0 0.0
  %157 = vmatprep.subr.mxu0 0.0
  %158 = vmatpush1.msra.mxu0 0.0
  %159 = vmatprep.subr.mxu0 0.0
  %160 = vmatpush1.msra.mxu0 0.0
  %161 = vmatprep.subr.mxu0 0.0
  %162 = vmatpush1.msra.mxu0 0.0
  %163 = vmatprep.subr.mxu0 0.0
  %164 = vmatpush1.msra.mxu0 0.0
  %165 = vmatprep.subr.mxu0 0.0
  %166 = vmatpush1.msra.mxu0 0.0
  %167 = vmatprep.subr.mxu0 0.0
  %168 = vmatpush1.msra.mxu0 0.0
  %169 = vmatprep.subr.mxu0 0.0
  %170 = vmatpush1.msra.mxu0 0.0
  %171 = vmatprep.subr.mxu0 0.0
  %172 = vmatpush1.msra.mxu0 0.0
  %173 = vmatprep.subr.mxu0 0.0
  %174 = vmatpush1.msra.mxu0 0.0
  %175 = vmatprep.subr.mxu0 0.0
  %176 = vmatpush1.msra.mxu0 0.0
  %177 = vmatprep.subr.mxu0 0.0
  %178 = vmatpush1.msra.mxu0 0.0
  %179 = vmatprep.subr.mxu0 0.0
  %180 = vmatpush1.msra.mxu0 0.0
  %181 = vmatprep.subr.mxu0 0.0
  %182 = vmatpush1.msra.mxu0 0.0
  %183 = vmatprep.subr.mxu0 0.0
  %184 = vmatpush1.msra.mxu0 0.0
  %185 = vmatprep.subr.mxu0 0.0
  %186 = vmatpush1.msra.mxu0 %v153
  %187 = vmatprep.subr.mxu0 0.0
  %188 = vmatpush2.msra.mxu0 0.0
  %189 = vmatprep.subr.mxu0 0.0
  %190 = vmatpush2.msra.mxu0 0.0
  %191 = vmatprep.subr.mxu0 0.0
  %192 = vmatpush2.msra.mxu0 0.0
  %193 = vmatprep.subr.mxu0 0.0
  %194 = vmatpush2.msra.mxu0 0.0
  %195 = vmatprep.subr.mxu0 0.0
  %196 = vmatpush2.msra.mxu0 0.0
  %197 = vmatprep.subr.mxu0 0.0
  %198 = vmatpush2.msra.mxu0 0.0
  %199 = vmatprep.subr.mxu0 0.0
  %200 = vmatpush2.msra.mxu0 0.0
  %201 = vmatprep.subr.mxu0 0.0
  %202 = vmatpush2.msra.mxu0 0.0
  %203 = vmatprep.subr.mxu0 0.0
  %204 = vmatpush2.msra.mxu0 0.0
  %205 = vmatprep.subr.mxu0 0.0
  %206 = vmatpush2.msra.mxu0 0.0
  %207 = vmatprep.subr.mxu0 0.0
  %208 = vmatpush2.msra.mxu0 0.0
  %209 = vmatprep.subr.mxu0 0.0
  %210 = vmatpush2.msra.mxu0 0.0
  %211 = vmatprep.subr.mxu0 0.0
  %212 = vmatpush2.msra.mxu0 0.0
  %213 = vmatprep.subr.mxu0 0.0
  %214 = vmatpush2.msra.mxu0 0.0
  %215 = vmatprep.subr.mxu0 0.0
  %216 = vmatpush2.msra.mxu0 0.0
  %217 = vmatprep.subr.mxu0 0.0
  %218 = vmatpush2.msra.mxu0 0.0
  %219 = vmatprep.mubr.f32.mxu0 0.0
  %220 = vmatmul.mubr.f32.gmra.mxu0 %v52
  %v221 = vpop.f32.mrf.mxu0
  %v222 = vadd.f32 %v33, %v221
  %v223 = vpop.f32.mrf.mxu0
  %224 = vmatprep.mubr.f32.mxu0 0.0
  %225 = vmatmul.mubr.f32.gmra.mxu0 %v55
  %v226 = vpop.f32.mrf.mxu0
  %v227 = vadd.f32 %v38, %v226
  %v228 = vpop.f32.mrf.mxu0
  %229 = vmatprep.mubr.f32.mxu0 0.0
  %230 = vmatmul.mubr.f32.gmra.mxu0 %v58
  %v231 = vpop.f32.mrf.mxu0
  %v232 = vadd.f32 %v43, %v231
  %v233 = vpop.f32.mrf.mxu0
  %234 = vmatprep.mubr.f32.mxu0 0.0
  %235 = vmatmul.mubr.f32.gmra.mxu0 %v61
  %v236 = vpop.f32.mrf.mxu0
  %v237 = vadd.f32 %v48, %v236
  %v238 = vpop.f32.mrf.mxu0
  %239 = vdwg.mxu0
  %v240 = vmax.f32 %v134, 0.0
  %v241 = vmax.f32 %v139, 0.0
  %v242 = vmax.f32 %v144, 0.0
  %v243 = vmax.f32 %v149, 0.0
  %v244 = vmax.f32 %v222, 0.0
  %v245 = vmax.f32 %v227, 0.0
  %v246 = vmax.f32 %v232, 0.0
  %v247 = vmax.f32 %v237, 0.0
  %v248 = vld [vmem:[%s3] sm:$0xff]
  %v249 = vld [vmem:[%s3 + $0x8] sm:$0xff]
  %v250 = vld [vmem:[%s3 + $0x10] sm:$0xff]
  %v251 = vld [vmem:[%s3 + $0x18] sm:$0xff]
  %v252 = vld [vmem:[%s3 + $0x20] sm:$0xff]
  %v253 = vld [vmem:[%s3 + $0x28] sm:$0xff]
  %v254 = vld [vmem:[%s3 + $0x30] sm:$0xff]
  %v255 = vld [vmem:[%s3 + $0x38] sm:$0xff]
  %v256 = vld [vmem:[%s4] sm:$0xff]
  %v257 = vld [vmem:[%s4 + $0x8] sm:$0xff]
  %v258 = vld [vmem:[%s4 + $0x10] sm:$0xff]
  %v259 = vld [vmem:[%s4 + $0x18] sm:$0xff]
  %v260 = vld [vmem:[%s4 + $0x20] sm:$0xff]
  %v261 = vld [vmem:[%s4 + $0x28] sm:$0xff]
  %v262 = vld [vmem:[%s4 + $0x30] sm:$0xff]
  %v263 = vld [vmem:[%s4 + $0x38] sm:$0xff]
  %265 = vset.pattern.permute.xlu0 0
  %266 = vperm.xlu0 %265, %v256
  %v267 = vpop.permute.xlu0 %266
  %270 = vset.pattern.permute.xlu0 0
  %271 = vperm.xlu0 %270, %v257
  %v272 = vpop.permute.xlu0 %271
  %275 = vset.pattern.permute.xlu0 0
  %276 = vperm.xlu0 %275, %v258
  %v277 = vpop.permute.xlu0 %276
  %280 = vset.pattern.permute.xlu0 0
  %281 = vperm.xlu0 %280, %v259
  %v282 = vpop.permute.xlu0 %281
  %285 = vset.pattern.permute.xlu0 0
  %286 = vperm.xlu0 %285, %v260
  %v287 = vpop.permute.xlu0 %286
  %290 = vset.pattern.permute.xlu0 0
  %291 = vperm.xlu0 %290, %v261
  %v292 = vpop.permute.xlu0 %291
  %295 = vset.pattern.permute.xlu0 0
  %296 = vperm.xlu0 %295, %v262
  %v297 = vpop.permute.xlu0 %296
  %300 = vset.pattern.permute.xlu0 0
  %301 = vperm.xlu0 %300, %v263
  %v302 = vpop.permute.xlu0 %301
  %vm304 = vcmask 261120
  %v306 = vsel %vm304, %v248, 0
  %v309 = vsel %vm304, %v249, 0
  %v312 = vsel %vm304, %v250, 0
  %v315 = vsel %vm304, %v251, 0
  %v318 = vsel %vm304, %v252, 0
  %v321 = vsel %vm304, %v253, 0
  %v324 = vsel %vm304, %v254, 0
  %v327 = vsel %vm304, %v255, 0
  %329 = vmatprep.subr.mxu0 0.0
  %330 = vmatpush1.msra.mxu0 0.0
  %331 = vmatprep.subr.mxu0 0.0
  %332 = vmatpush1.msra.mxu0 0.0
  %333 = vmatprep.subr.mxu0 0.0
  %334 = vmatpush1.msra.mxu0 0.0
  %335 = vmatprep.subr.mxu0 0.0
  %336 = vmatpush1.msra.mxu0 0.0
  %337 = vmatprep.subr.mxu0 0.0
  %338 = vmatpush1.msra.mxu0 0.0
  %339 = vmatprep.subr.mxu0 0.0
  %340 = vmatpush1.msra.mxu0 0.0
  %341 = vmatprep.subr.mxu0 0.0
  %342 = vmatpush1.msra.mxu0 0.0
  %343 = vmatprep.subr.mxu0 0.0
  %344 = vmatpush1.msra.mxu0 0.0
  %345 = vmatprep.subr.mxu0 0.0
  %346 = vmatpush1.msra.mxu0 0.0
  %347 = vmatprep.subr.mxu0 0.0
  %348 = vmatpush1.msra.mxu0 0.0
  %349 = vmatprep.subr.mxu0 0.0
  %350 = vmatpush1.msra.mxu0 0.0
  %351 = vmatprep.subr.mxu0 0.0
  %352 = vmatpush1.msra.mxu0 0.0
  %353 = vmatprep.subr.mxu0 0.0
  %354 = vmatpush1.msra.mxu0 %v243
  %355 = vmatprep.subr.mxu0 0.0
  %356 = vmatpush1.msra.mxu0 %v242
  %357 = vmatprep.subr.mxu0 0.0
  %358 = vmatpush1.msra.mxu0 %v241
  %359 = vmatprep.subr.mxu0 0.0
  %360 = vmatpush1.msra.mxu0 %v240
  %361 = vmatprep.subr.mxu0 0.0
  %362 = vmatpush2.msra.mxu0 0.0
  %363 = vmatprep.subr.mxu0 0.0
  %364 = vmatpush2.msra.mxu0 0.0
  %365 = vmatprep.subr.mxu0 0.0
  %366 = vmatpush2.msra.mxu0 0.0
  %367 = vmatprep.subr.mxu0 0.0
  %368 = vmatpush2.msra.mxu0 0.0
  %369 = vmatprep.subr.mxu0 0.0
  %370 = vmatpush2.msra.mxu0 0.0
  %371 = vmatprep.subr.mxu0 0.0
  %372 = vmatpush2.msra.mxu0 0.0
  %373 = vmatprep.subr.mxu0 0.0
  %374 = vmatpush2.msra.mxu0 0.0
  %375 = vmatprep.subr.mxu0 0.0
  %376 = vmatpush2.msra.mxu0 0.0
  %377 = vmatprep.subr.mxu0 0.0
  %378 = vmatpush2.msra.mxu0 0.0
  %379 = vmatprep.subr.mxu0 0.0
  %380 = vmatpush2.msra.mxu0 0.0
  %381 = vmatprep.subr.mxu0 0.0
  %382 = vmatpush2.msra.mxu0 0.0
  %383 = vmatprep.subr.mxu0 0.0
  %384 = vmatpush2.msra.mxu0 0.0
  %385 = vmatprep.subr.mxu0 0.0
  %386 = vmatpush2.msra.mxu0 0.0
  %387 = vmatprep.subr.mxu0 0.0
  %388 = vmatpush2.msra.mxu0 0.0
  %389 = vmatprep.subr.mxu0 0.0
  %390 = vmatpush2.msra.mxu0 0.0
  %391 = vmatprep.subr.mxu0 0.0
  %392 = vmatpush2.msra.mxu0 0.0
  %393 = vmatprep.mubr.f32.mxu0 0.0
  %394 = vmatmul.mubr.f32.gmra.mxu0 %v306
  %v395 = vpop.f32.mrf.mxu0
  %v396 = vadd.f32 %v267, %v395
  %v397 = vpop.f32.mrf.mxu0
  %398 = vmatprep.mubr.f32.mxu0 0.0
  %399 = vmatmul.mubr.f32.gmra.mxu0 %v309
  %v400 = vpop.f32.mrf.mxu0
  %v401 = vadd.f32 %v272, %v400
  %v402 = vpop.f32.mrf.mxu0
  %403 = vmatprep.mubr.f32.mxu0 0.0
  %404 = vmatmul.mubr.f32.gmra.mxu0 %v312
  %v405 = vpop.f32.mrf.mxu0
  %v406 = vadd.f32 %v277, %v405
  %v407 = vpop.f32.mrf.mxu0
  %408 = vmatprep.mubr.f32.mxu0 0.0
  %409 = vmatmul.mubr.f32.gmra.mxu0 %v315
  %v410 = vpop.f32.mrf.mxu0
  %v411 = vadd.f32 %v282, %v410
  %v412 = vpop.f32.mrf.mxu0
  %413 = vmatprep.mubr.f32.mxu0 0.0
  %414 = vmatmul.mubr.f32.gmra.mxu0 %v318
  %v415 = vpop.f32.mrf.mxu0
  %v416 = vadd.f32 %v287, %v415
  %v417 = vpop.f32.mrf.mxu0
  %418 = vmatprep.mubr.f32.mxu0 0.0
  %419 = vmatmul.mubr.f32.gmra.mxu0 %v321
  %v420 = vpop.f32.mrf.mxu0
  %v421 = vadd.f32 %v292, %v420
  %v422 = vpop.f32.mrf.mxu0
  %423 = vmatprep.mubr.f32.mxu0 0.0
  %424 = vmatmul.mubr.f32.gmra.mxu0 %v324
  %v425 = vpop.f32.mrf.mxu0
  %v426 = vadd.f32 %v297, %v425
  %v427 = vpop.f32.mrf.mxu0
  %428 = vmatprep.mubr.f32.mxu0 0.0
  %429 = vmatmul.mubr.f32.gmra.mxu0 %v327
  %v430 = vpop.f32.mrf.mxu0
  %v431 = vadd.f32 %v302, %v430
  %v432 = vpop.f32.mrf.mxu0
  %433 = vdwg.mxu0
  %434 = vmatprep.subr.mxu0 0.0
  %435 = vmatpush1.msra.mxu0 0.0
  %436 = vmatprep.subr.mxu0 0.0
  %437 = vmatpush1.msra.mxu0 0.0
  %438 = vmatprep.subr.mxu0 0.0
  %439 = vmatpush1.msra.mxu0 0.0
  %440 = vmatprep.subr.mxu0 0.0
  %441 = vmatpush1.msra.mxu0 0.0
  %442 = vmatprep.subr.mxu0 0.0
  %443 = vmatpush1.msra.mxu0 0.0
  %444 = vmatprep.subr.mxu0 0.0
  %445 = vmatpush1.msra.mxu0 0.0
  %446 = vmatprep.subr.mxu0 0.0
  %447 = vmatpush1.msra.mxu0 0.0
  %448 = vmatprep.subr.mxu0 0.0
  %449 = vmatpush1.msra.mxu0 0.0
  %450 = vmatprep.subr.mxu0 0.0
  %451 = vmatpush1.msra.mxu0 0.0
  %452 = vmatprep.subr.mxu0 0.0
  %453 = vmatpush1.msra.mxu0 0.0
  %454 = vmatprep.subr.mxu0 0.0
  %455 = vmatpush1.msra.mxu0 0.0
  %456 = vmatprep.subr.mxu0 0.0
  %457 = vmatpush1.msra.mxu0 0.0
  %458 = vmatprep.subr.mxu0 0.0
  %459 = vmatpush1.msra.mxu0 %v247
  %460 = vmatprep.subr.mxu0 0.0
  %461 = vmatpush1.msra.mxu0 %v246
  %462 = vmatprep.subr.mxu0 0.0
  %463 = vmatpush1.msra.mxu0 %v245
  %464 = vmatprep.subr.mxu0 0.0
  %465 = vmatpush1.msra.mxu0 %v244
  %466 = vmatprep.subr.mxu0 0.0
  %467 = vmatpush2.msra.mxu0 0.0
  %468 = vmatprep.subr.mxu0 0.0
  %469 = vmatpush2.msra.mxu0 0.0
  %470 = vmatprep.subr.mxu0 0.0
  %471 = vmatpush2.msra.mxu0 0.0
  %472 = vmatprep.subr.mxu0 0.0
  %473 = vmatpush2.msra.mxu0 0.0
  %474 = vmatprep.subr.mxu0 0.0
  %475 = vmatpush2.msra.mxu0 0.0
  %476 = vmatprep.subr.mxu0 0.0
  %477 = vmatpush2.msra.mxu0 0.0
  %478 = vmatprep.subr.mxu0 0.0
  %479 = vmatpush2.msra.mxu0 0.0
  %480 = vmatprep.subr.mxu0 0.0
  %481 = vmatpush2.msra.mxu0 0.0
  %482 = vmatprep.subr.mxu0 0.0
  %483 = vmatpush2.msra.mxu0 0.0
  %484 = vmatprep.subr.mxu0 0.0
  %485 = vmatpush2.msra.mxu0 0.0
  %486 = vmatprep.subr.mxu0 0.0
  %487 = vmatpush2.msra.mxu0 0.0
  %488 = vmatprep.subr.mxu0 0.0
  %489 = vmatpush2.msra.mxu0 0.0
  %490 = vmatprep.subr.mxu0 0.0
  %491 = vmatpush2.msra.mxu0 0.0
  %492 = vmatprep.subr.mxu0 0.0
  %493 = vmatpush2.msra.mxu0 0.0
  %494 = vmatprep.subr.mxu0 0.0
  %495 = vmatpush2.msra.mxu0 0.0
  %496 = vmatprep.subr.mxu0 0.0
  %497 = vmatpush2.msra.mxu0 0.0
  %498 = vmatprep.mubr.f32.mxu0 0.0
  %499 = vmatmul.mubr.f32.gmra.mxu0 %v306
  %v500 = vpop.f32.mrf.mxu0
  %v501 = vadd.f32 %v267, %v500
  %v502 = vpop.f32.mrf.mxu0
  %503 = vmatprep.mubr.f32.mxu0 0.0
  %504 = vmatmul.mubr.f32.gmra.mxu0 %v309
  %v505 = vpop.f32.mrf.mxu0
  %v506 = vadd.f32 %v272, %v505
  %v507 = vpop.f32.mrf.mxu0
  %508 = vmatprep.mubr.f32.mxu0 0.0
  %509 = vmatmul.mubr.f32.gmra.mxu0 %v312
  %v510 = vpop.f32.mrf.mxu0
  %v511 = vadd.f32 %v277, %v510
  %v512 = vpop.f32.mrf.mxu0
  %513 = vmatprep.mubr.f32.mxu0 0.0
  %514 = vmatmul.mubr.f32.gmra.mxu0 %v315
  %v515 = vpop.f32.mrf.mxu0
  %v516 = vadd.f32 %v282, %v515
  %v517 = vpop.f32.mrf.mxu0
  %518 = vmatprep.mubr.f32.mxu0 0.0
  %519 = vmatmul.mubr.f32.gmra.mxu0 %v318
  %v520 = vpop.f32.mrf.mxu0
  %v521 = vadd.f32 %v287, %v520
  %v522 = vpop.f32.mrf.mxu0
  %523 = vmatprep.mubr.f32.mxu0 0.0
  %524 = vmatmul.mubr.f32.gmra.mxu0 %v321
  %v525 = vpop.f32.mrf.mxu0
  %v526 = vadd.f32 %v292, %v525
  %v527 = vpop.f32.mrf.mxu0
  %528 = vmatprep.mubr.f32.mxu0 0.0
  %529 = vmatmul.mubr.f32.gmra.mxu0 %v324
  %v530 = vpop.f32.mrf.mxu0
  %v531 = vadd.f32 %v297, %v530
  %v532 = vpop.f32.mrf.mxu0
  %533 = vmatprep.mubr.f32.mxu0 0.0
  %534 = vmatmul.mubr.f32.gmra.mxu0 %v327
  %v535 = vpop.f32.mrf.mxu0
  %v536 = vadd.f32 %v302, %v535
  %v537 = vpop.f32.mrf.mxu0
  %538 = vdwg.mxu0
  %vm539 = vcmask 15360
  %v540 = vsel %vm539, %v396, -inf
  %541 = vmax.xlane.f32.xlu0 %v540
  %v542 = vpop.xlane.xlu0 %541
  %v543 = vsel %vm539, %v401, -inf
  %544 = vmax.xlane.f32.xlu0 %v543
  %v545 = vpop.xlane.xlu0 %544
  %v546 = vsel %vm539, %v406, -inf
  %547 = vmax.xlane.f32.xlu0 %v546
  %v548 = vpop.xlane.xlu0 %547
  %v549 = vsel %vm539, %v411, -inf
  %550 = vmax.xlane.f32.xlu0 %v549
  %v551 = vpop.xlane.xlu0 %550
  %v552 = vsel %vm539, %v416, -inf
  %553 = vmax.xlane.f32.xlu0 %v552
  %v554 = vpop.xlane.xlu0 %553
  %v555 = vsel %vm539, %v421, -inf
  %556 = vmax.xlane.f32.xlu0 %v555
  %v557 = vpop.xlane.xlu0 %556
  %v558 = vsel %vm539, %v426, -inf
  %559 = vmax.xlane.f32.xlu0 %v558
  %v560 = vpop.xlane.xlu0 %559
  %v561 = vsel %vm539, %v431, -inf
  %562 = vmax.xlane.f32.xlu0 %v561
  %v563 = vpop.xlane.xlu0 %562
  %v564 = vsel %vm539, %v501, -inf
  %565 = vmax.xlane.f32.xlu0 %v564
  %v566 = vpop.xlane.xlu0 %565
  %v567 = vsel %vm539, %v506, -inf
  %568 = vmax.xlane.f32.xlu0 %v567
  %v569 = vpop.xlane.xlu0 %568
  %v570 = vsel %vm539, %v511, -inf
  %571 = vmax.xlane.f32.xlu0 %v570
  %v572 = vpop.xlane.xlu0 %571
  %v573 = vsel %vm539, %v516, -inf
  %574 = vmax.xlane.f32.xlu0 %v573
  %v575 = vpop.xlane.xlu0 %574
  %v576 = vsel %vm539, %v521, -inf
  %577 = vmax.xlane.f32.xlu0 %v576
  %v578 = vpop.xlane.xlu0 %577
  %v579 = vsel %vm539, %v526, -inf
  %580 = vmax.xlane.f32.xlu0 %v579
  %v581 = vpop.xlane.xlu0 %580
  %v582 = vsel %vm539, %v531, -inf
  %583 = vmax.xlane.f32.xlu0 %v582
  %v584 = vpop.xlane.xlu0 %583
  %v585 = vsel %vm539, %v536, -inf
  %586 = vmax.xlane.f32.xlu0 %v585
  %v587 = vpop.xlane.xlu0 %586
  %vm588 = vcmask 31760
  %v589 = vsel %vm588, %v396, -inf
  %590 = vmax.xlane.f32.xlu0 %v589
  %v591 = vpop.xlane.xlu0 %590
  %v592 = vsel %vm588, %v401, -inf
  %593 = vmax.xlane.f32.xlu0 %v592
  %v594 = vpop.xlane.xlu0 %593
  %v595 = vsel %vm588, %v406, -inf
  %596 = vmax.xlane.f32.xlu0 %v595
  %v597 = vpop.xlane.xlu0 %596
  %v598 = vsel %vm588, %v411, -inf
  %599 = vmax.xlane.f32.xlu0 %v598
  %v600 = vpop.xlane.xlu0 %599
  %v601 = vsel %vm588, %v416, -inf
  %602 = vmax.xlane.f32.xlu0 %v601
  %v603 = vpop.xlane.xlu0 %602
  %v604 = vsel %vm588, %v421, -inf
  %605 = vmax.xlane.f32.xlu0 %v604
  %v606 = vpop.xlane.xlu0 %605
  %v607 = vsel %vm588, %v426, -inf
  %608 = vmax.xlane.f32.xlu0 %v607
  %v609 = vpop.xlane.xlu0 %608
  %v610 = vsel %vm588, %v431, -inf
  %611 = vmax.xlane.f32.xlu0 %v610
  %v612 = vpop.xlane.xlu0 %611
  %v613 = vsel %vm588, %v501, -inf
  %614 = vmax.xlane.f32.xlu0 %v613
  %v615 = vpop.xlane.xlu0 %614
  %v616 = vsel %vm588, %v506, -inf
  %617 = vmax.xlane.f32.xlu0 %v616
  %v618 = vpop.xlane.xlu0 %617
  %v619 = vsel %vm588, %v511, -inf
  %620 = vmax.xlane.f32.xlu0 %v619
  %v621 = vpop.xlane.xlu0 %620
  %v622 = vsel %vm588, %v516, -inf
  %623 = vmax.xlane.f32.xlu0 %v622
  %v624 = vpop.xlane.xlu0 %623
  %v625 = vsel %vm588, %v521, -inf
  %626 = vmax.xlane.f32.xlu0 %v625
  %v627 = vpop.xlane.xlu0 %626
  %v628 = vsel %vm588, %v526, -inf
  %629 = vmax.xlane.f32.xlu0 %v628
  %v630 = vpop.xlane.xlu0 %629
  %v631 = vsel %vm588, %v531, -inf
  %632 = vmax.xlane.f32.xlu0 %v631
  %v633 = vpop.xlane.xlu0 %632
  %v634 = vsel %vm588, %v536, -inf
  %635 = vmax.xlane.f32.xlu0 %v634
  %v636 = vpop.xlane.xlu0 %635
  %vm637 = vcmask 48160
  %v638 = vsel %vm637, %v396, -inf
  %639 = vmax.xlane.f32.xlu0 %v638
  %v640 = vpop.xlane.xlu0 %639
  %v641 = vsel %vm637, %v401, -inf
  %642 = vmax.xlane.f32.xlu0 %v641
  %v643 = vpop.xlane.xlu0 %642
  %v644 = vsel %vm637, %v406, -inf
  %645 = vmax.xlane.f32.xlu0 %v644
  %v646 = vpop.xlane.xlu0 %645
  %v647 = vsel %vm637, %v411, -inf
  %648 = vmax.xlane.f32.xlu0 %v647
  %v649 = vpop.xlane.xlu0 %648
  %v650 = vsel %vm637, %v416, -inf
  %651 = vmax.xlane.f32.xlu0 %v650
  %v652 = vpop.xlane.xlu0 %651
  %v653 = vsel %vm637, %v421, -inf
  %654 = vmax.xlane.f32.xlu0 %v653
  %v655 = vpop.xlane.xlu0 %654
  %v656 = vsel %vm637, %v426, -inf
  %657 = vmax.xlane.f32.xlu0 %v656
  %v658 = vpop.xlane.xlu0 %657
  %v659 = vsel %vm637, %v431, -inf
  %660 = vmax.xlane.f32.xlu0 %v659
  %v661 = vpop.xlane.xlu0 %660
  %v662 = vsel %vm637, %v501, -inf
  %663 = vmax.xlane.f32.xlu0 %v662
  %v664 = vpop.xlane.xlu0 %663
  %v665 = vsel %vm637, %v506, -inf
  %666 = vmax.xlane.f32.xlu0 %v665
  %v667 = vpop.xlane.xlu0 %666
  %v668 = vsel %vm637, %v511, -inf
  %669 = vmax.xlane.f32.xlu0 %v668
  %v670 = vpop.xlane.xlu0 %669
  %v671 = vsel %vm637, %v516, -inf
  %672 = vmax.xlane.f32.xlu0 %v671
  %v673 = vpop.xlane.xlu0 %672
  %v674 = vsel %vm637, %v521, -inf
  %675 = vmax.xlane.f32.xlu0 %v674
  %v676 = vpop.xlane.xlu0 %675
  %v677 = vsel %vm637, %v526, -inf
  %678 = vmax.xlane.f32.xlu0 %v677
  %v679 = vpop.xlane.xlu0 %678
  %v680 = vsel %vm637, %v531, -inf
  %681 = vmax.xlane.f32.xlu0 %v680
  %v682 = vpop.xlane.xlu0 %681
  %v683 = vsel %vm637, %v536, -inf
  %684 = vmax.xlane.f32.xlu0 %v683
  %v685 = vpop.xlane.xlu0 %684
  %vm686 = vcmask 64560
  %v687 = vsel %vm686, %v396, -inf
  %688 = vmax.xlane.f32.xlu0 %v687
  %v689 = vpop.xlane.xlu0 %688
  %v690 = vsel %vm686, %v401, -inf
  %691 = vmax.xlane.f32.xlu0 %v690
  %v692 = vpop.xlane.xlu0 %691
  %v693 = vsel %vm686, %v406, -inf
  %694 = vmax.xlane.f32.xlu0 %v693
  %v695 = vpop.xlane.xlu0 %694
  %v696 = vsel %vm686, %v411, -inf
  %697 = vmax.xlane.f32.xlu0 %v696
  %v698 = vpop.xlane.xlu0 %697
  %v699 = vsel %vm686, %v416, -inf
  %700 = vmax.xlane.f32.xlu0 %v699
  %v701 = vpop.xlane.xlu0 %700
  %v702 = vsel %vm686, %v421, -inf
  %703 = vmax.xlane.f32.xlu0 %v702
  %v704 = vpop.xlane.xlu0 %703
  %v705 = vsel %vm686, %v426, -inf
  %706 = vmax.xlane.f32.xlu0 %v705
  %v707 = vpop.xlane.xlu0 %706
  %v708 = vsel %vm686, %v431, -inf
  %709 = vmax.xlane.f32.xlu0 %v708
  %v710 = vpop.xlane.xlu0 %709
  %v711 = vsel %vm686, %v501, -inf
  %712 = vmax.xlane.f32.xlu0 %v711
  %v713 = vpop.xlane.xlu0 %712
  %v714 = vsel %vm686, %v506, -inf
  %715 = vmax.xlane.f32.xlu0 %v714
  %v716 = vpop.xlane.xlu0 %715
  %v717 = vsel %vm686, %v511, -inf
  %718 = vmax.xlane.f32.xlu0 %v717
  %v719 = vpop.xlane.xlu0 %718
  %v720 = vsel %vm686, %v516, -inf
  %721 = vmax.xlane.f32.xlu0 %v720
  %v722 = vpop.xlane.xlu0 %721
  %v723 = vsel %vm686, %v521, -inf
  %724 = vmax.xlane.f32.xlu0 %v723
  %v725 = vpop.xlane.xlu0 %724
  %v726 = vsel %vm686, %v526, -inf
  %727 = vmax.xlane.f32.xlu0 %v726
  %v728 = vpop.xlane.xlu0 %727
  %v729 = vsel %vm686, %v531, -inf
  %730 = vmax.xlane.f32.xlu0 %v729
  %v731 = vpop.xlane.xlu0 %730
  %v732 = vsel %vm686, %v536, -inf
  %733 = vmax.xlane.f32.xlu0 %v732
  %v734 = vpop.xlane.xlu0 %733
  %vm735 = vcmask 80960
  %v736 = vsel %vm735, %v396, -inf
  %737 = vmax.xlane.f32.xlu0 %v736
  %v738 = vpop.xlane.xlu0 %737
  %v739 = vsel %vm735, %v401, -inf
  %740 = vmax.xlane.f32.xlu0 %v739
  %v741 = vpop.xlane.xlu0 %740
  %v742 = vsel %vm735, %v406, -inf
  %743 = vmax.xlane.f32.xlu0 %v742
  %v744 = vpop.xlane.xlu0 %743
  %v745 = vsel %vm735, %v411, -inf
  %746 = vmax.xlane.f32.xlu0 %v745
  %v747 = vpop.xlane.xlu0 %746
  %v748 = vsel %vm735, %v416, -inf
  %749 = vmax.xlane.f32.xlu0 %v748
  %v750 = vpop.xlane.xlu0 %749
  %v751 = vsel %vm735, %v421, -inf
  %752 = vmax.xlane.f32.xlu0 %v751
  %v753 = vpop.xlane.xlu0 %752
  %v754 = vsel %vm735, %v426, -inf
  %755 = vmax.xlane.f32.xlu0 %v754
  %v756 = vpop.xlane.xlu0 %755
  %v757 = vsel %vm735, %v431, -inf
  %758 = vmax.xlane.f32.xlu0 %v757
  %v759 = vpop.xlane.xlu0 %758
  %v760 = vsel %vm735, %v501, -inf
  %761 = vmax.xlane.f32.xlu0 %v760
  %v762 = vpop.xlane.xlu0 %761
  %v763 = vsel %vm735, %v506, -inf
  %764 = vmax.xlane.f32.xlu0 %v763
  %v765 = vpop.xlane.xlu0 %764
  %v766 = vsel %vm735, %v511, -inf
  %767 = vmax.xlane.f32.xlu0 %v766
  %v768 = vpop.xlane.xlu0 %767
  %v769 = vsel %vm735, %v516, -inf
  %770 = vmax.xlane.f32.xlu0 %v769
  %v771 = vpop.xlane.xlu0 %770
  %v772 = vsel %vm735, %v521, -inf
  %773 = vmax.xlane.f32.xlu0 %v772
  %v774 = vpop.xlane.xlu0 %773
  %v775 = vsel %vm735, %v526, -inf
  %776 = vmax.xlane.f32.xlu0 %v775
  %v777 = vpop.xlane.xlu0 %776
  %v778 = vsel %vm735, %v531, -inf
  %779 = vmax.xlane.f32.xlu0 %v778
  %v780 = vpop.xlane.xlu0 %779
  %v781 = vsel %vm735, %v536, -inf
  %782 = vmax.xlane.f32.xlu0 %v781
  %v783 = vpop.xlane.xlu0 %782
  %vm784 = vcmask 97360
  %v785 = vsel %vm784, %v396, -inf
  %786 = vmax.xlane.f32.xlu0 %v785
  %v787 = vpop.xlane.xlu0 %786
  %v788 = vsel %vm784, %v401, -inf
  %789 = vmax.xlane.f32.xlu0 %v788
  %v790 = vpop.xlane.xlu0 %789
  %v791 = vsel %vm784, %v406, -inf
  %792 = vmax.xlane.f32.xlu0 %v791
  %v793 = vpop.xlane.xlu0 %792
  %v794 = vsel %vm784, %v411, -inf
  %795 = vmax.xlane.f32.xlu0 %v794
  %v796 = vpop.xlane.xlu0 %795
  %v797 = vsel %vm784, %v416, -inf
  %798 = vmax.xlane.f32.xlu0 %v797
  %v799 = vpop.xlane.xlu0 %798
  %v800 = vsel %vm784, %v421, -inf
  %801 = vmax.xlane.f32.xlu0 %v800
  %v802 = vpop.xlane.xlu0 %801
  %v803 = vsel %vm784, %v426, -inf
  %804 = vmax.xlane.f32.xlu0 %v803
  %v805 = vpop.xlane.xlu0 %804
  %v806 = vsel %vm784, %v431, -inf
  %807 = vmax.xlane.f32.xlu0 %v806
  %v808 = vpop.xlane.xlu0 %807
  %v809 = vsel %vm784, %v501, -inf
  %810 = vmax.xlane.f32.xlu0 %v809
  %v811 = vpop.xlane.xlu0 %810
  %v812 = vsel %vm784, %v506, -inf
  %813 = vmax.xlane.f32.xlu0 %v812
  %v814 = vpop.xlane.xlu0 %813
  %v815 = vsel %vm784, %v511, -inf
  %816 = vmax.xlane.f32.xlu0 %v815
  %v817 = vpop.xlane.xlu0 %816
  %v818 = vsel %vm784, %v516, -inf
  %819 = vmax.xlane.f32.xlu0 %v818
  %v820 = vpop.xlane.xlu0 %819
  %v821 = vsel %vm784, %v521, -inf
  %822 = vmax.xlane.f32.xlu0 %v821
  %v823 = vpop.xlane.xlu0 %822
  %v824 = vsel %vm784, %v526, -inf
  %825 = vmax.xlane.f32.xlu0 %v824
  %v826 = vpop.xlane.xlu0 %825
  %v827 = vsel %vm784, %v531, -inf
  %828 = vmax.xlane.f32.xlu0 %v827
  %v829 = vpop.xlane.xlu0 %828
  %v830 = vsel %vm784, %v536, -inf
  %831 = vmax.xlane.f32.xlu0 %v830
  %v832 = vpop.xlane.xlu0 %831
  %vm833 = vcmask 113760
  %v834 = vsel %vm833, %v396, -inf
  %835 = vmax.xlane.f32.xlu0 %v834
  %v836 = vpop.xlane.xlu0 %835
  %v837 = vsel %vm833, %v401, -inf
  %838 = vmax.xlane.f32.xlu0 %v837
  %v839 = vpop.xlane.xlu0 %838
  %v840 = vsel %vm833, %v406, -inf
  %841 = vmax.xlane.f32.xlu0 %v840
  %v842 = vpop.xlane.xlu0 %841
  %v843 = vsel %vm833, %v411, -inf
  %844 = vmax.xlane.f32.xlu0 %v843
  %v845 = vpop.xlane.xlu0 %844
  %v846 = vsel %vm833, %v416, -inf
  %847 = vmax.xlane.f32.xlu0 %v846
  %v848 = vpop.xlane.xlu0 %847
  %v849 = vsel %vm833, %v421, -inf
  %850 = vmax.xlane.f32.xlu0 %v849
  %v851 = vpop.xlane.xlu0 %850
  %v852 = vsel %vm833, %v426, -inf
  %853 = vmax.xlane.f32.xlu0 %v852
  %v854 = vpop.xlane.xlu0 %853
  %v855 = vsel %vm833, %v431, -inf
  %856 = vmax.xlane.f32.xlu0 %v855
  %v857 = vpop.xlane.xlu0 %856
  %v858 = vsel %vm833, %v501, -inf
  %859 = vmax.xlane.f32.xlu0 %v858
  %v860 = vpop.xlane.xlu0 %859
  %v861 = vsel %vm833, %v506, -inf
  %862 = vmax.xlane.f32.xlu0 %v861
  %v863 = vpop.xlane.xlu0 %862
  %v864 = vsel %vm833, %v511, -inf
  %865 = vmax.xlane.f32.xlu0 %v864
  %v866 = vpop.xlane.xlu0 %865
  %v867 = vsel %vm833, %v516, -inf
  %868 = vmax.xlane.f32.xlu0 %v867
  %v869 = vpop.xlane.xlu0 %868
  %v870 = vsel %vm833, %v521, -inf
  %871 = vmax.xlane.f32.xlu0 %v870
  %v872 = vpop.xlane.xlu0 %871
  %v873 = vsel %vm833, %v526, -inf
  %874 = vmax.xlane.f32.xlu0 %v873
  %v875 = vpop.xlane.xlu0 %874
  %v876 = vsel %vm833, %v531, -inf
  %877 = vmax.xlane.f32.xlu0 %v876
  %v878 = vpop.xlane.xlu0 %877
  %v879 = vsel %vm833, %v536, -inf
  %880 = vmax.xlane.f32.xlu0 %v879
  %v881 = vpop.xlane.xlu0 %880
  %vm882 = vcmask 130160
  %v883 = vsel %vm882, %v396, -inf
  %884 = vmax.xlane.f32.xlu0 %v883
  %v885 = vpop.xlane.xlu0 %884
  %v886 = vsel %vm882, %v401, -inf
  %887 = vmax.xlane.f32.xlu0 %v886
  %v888 = vpop.xlane.xlu0 %887
  %v889 = vsel %vm882, %v406, -inf
  %890 = vmax.xlane.f32.xlu0 %v889
  %v891 = vpop.xlane.xlu0 %890
  %v892 = vsel %vm882, %v411, -inf
  %893 = vmax.xlane.f32.xlu0 %v892
  %v894 = vpop.xlane.xlu0 %893
  %v895 = vsel %vm882, %v416, -inf
  %896 = vmax.xlane.f32.xlu0 %v895
  %v897 = vpop.xlane.xlu0 %896
  %v898 = vsel %vm882, %v421, -inf
  %899 = vmax.xlane.f32.xlu0 %v898
  %v900 = vpop.xlane.xlu0 %899
  %v901 = vsel %vm882, %v426, -inf
  %902 = vmax.xlane.f32.xlu0 %v901
  %v903 = vpop.xlane.xlu0 %902
  %v904 = vsel %vm882, %v431, -inf
  %905 = vmax.xlane.f32.xlu0 %v904
  %v906 = vpop.xlane.xlu0 %905
  %v907 = vsel %vm882, %v501, -inf
  %908 = vmax.xlane.f32.xlu0 %v907
  %v909 = vpop.xlane.xlu0 %908
  %v910 = vsel %vm882, %v506, -inf
  %911 = vmax.xlane.f32.xlu0 %v910
  %v912 = vpop.xlane.xlu0 %911
  %v913 = vsel %vm882, %v511, -inf
  %914 = vmax.xlane.f32.xlu0 %v913
  %v915 = vpop.xlane.xlu0 %914
  %v916 = vsel %vm882, %v516, -inf
  %917 = vmax.xlane.f32.xlu0 %v916
  %v918 = vpop.xlane.xlu0 %917
  %v919 = vsel %vm882, %v521, -inf
  %920 = vmax.xlane.f32.xlu0 %v919
  %v921 = vpop.xlane.xlu0 %920
  %v922 = vsel %vm882, %v526, -inf
  %923 = vmax.xlane.f32.xlu0 %v922
  %v924 = vpop.xlane.xlu0 %923
  %v925 = vsel %vm882, %v531, -inf
  %926 = vmax.xlane.f32.xlu0 %v925
  %v927 = vpop.xlane.xlu0 %926
  %v928 = vsel %vm882, %v536, -inf
  %929 = vmax.xlane.f32.xlu0 %v928
  %v930 = vpop.xlane.xlu0 %929
  %vm931 = vcmask 7168
  %v932 = vsel %vm931, %v542, %v591
  %v933 = vsel %vm931, %v545, %v594
  %v934 = vsel %vm931, %v548, %v597
  %v935 = vsel %vm931, %v551, %v600
  %v936 = vsel %vm931, %v554, %v603
  %v937 = vsel %vm931, %v557, %v606
  %v938 = vsel %vm931, %v560, %v609
  %v939 = vsel %vm931, %v563, %v612
  %v940 = vsel %vm931, %v566, %v615
  %v941 = vsel %vm931, %v569, %v618
  %v942 = vsel %vm931, %v572, %v621
  %v943 = vsel %vm931, %v575, %v624
  %v944 = vsel %vm931, %v578, %v627
  %v945 = vsel %vm931, %v581, %v630
  %v946 = vsel %vm931, %v584, %v633
  %v947 = vsel %vm931, %v587, %v636
  %v948 = vsel %vm539, %v932, %v640
  %v949 = vsel %vm539, %v933, %v643
  %v950 = vsel %vm539, %v934, %v646
  %v951 = vsel %vm539, %v935, %v649
  %v952 = vsel %vm539, %v936, %v652
  %v953 = vsel %vm539, %v937, %v655
  %v954 = vsel %vm539, %v938, %v658
  %v955 = vsel %vm539, %v939, %v661
  %v956 = vsel %vm539, %v940, %v664
  %v957 = vsel %vm539, %v941, %v667
  %v958 = vsel %vm539, %v942, %v670
  %v959 = vsel %vm539, %v943, %v673
  %v960 = vsel %vm539, %v944, %v676
  %v961 = vsel %vm539, %v945, %v679
  %v962 = vsel %vm539, %v946, %v682
  %v963 = vsel %vm539, %v947, %v685
  %vm964 = vcmask 23552
  %v965 = vsel %vm964, %v948, %v689
  %v966 = vsel %vm964, %v949, %v692
  %v967 = vsel %vm964, %v950, %v695
  %v968 = vsel %vm964, %v951, %v698
  %v969 = vsel %vm964, %v952, %v701
  %v970 = vsel %vm964, %v953, %v704
  %v971 = vsel %vm964, %v954, %v707
  %v972 = vsel %vm964, %v955, %v710
  %v973 = vsel %vm964, %v956, %v713
  %v974 = vsel %vm964, %v957, %v716
  %v975 = vsel %vm964, %v958, %v719
  %v976 = vsel %vm964, %v959, %v722
  %v977 = vsel %vm964, %v960, %v725
  %v978 = vsel %vm964, %v961, %v728
  %v979 = vsel %vm964, %v962, %v731
  %v980 = vsel %vm964, %v963, %v734
  %v981 = vsel %vm50, %v965, %v738
  %v982 = vsel %vm50, %v966, %v741
  %v983 = vsel %vm50, %v967, %v744
  %v984 = vsel %vm50, %v968, %v747
  %v985 = vsel %vm50, %v969, %v750
  %v986 = vsel %vm50, %v970, %v753
  %v987 = vsel %vm50, %v971, %v756
  %v988 = vsel %vm50, %v972, %v759
  %v989 = vsel %vm50, %v973, %v762
  %v990 = vsel %vm50, %v974, %v765
  %v991 = vsel %vm50, %v975, %v768
  %v992 = vsel %vm50, %v976, %v771
  %v993 = vsel %vm50, %v977, %v774
  %v994 = vsel %vm50, %v978, %v777
  %v995 = vsel %vm50, %v979, %v780
  %v996 = vsel %vm50, %v980, %v783
  %vm997 = vcmask 39936
  %v998 = vsel %vm997, %v981, %v787
  %v999 = vsel %vm997, %v982, %v790
  %v1000 = vsel %vm997, %v983, %v793
  %v1001 = vsel %vm997, %v984, %v796
  %v1002 = vsel %vm997, %v985, %v799
  %v1003 = vsel %vm997, %v986, %v802
  %v1004 = vsel %vm997, %v987, %v805
  %v1005 = vsel %vm997, %v988, %v808
  %v1006 = vsel %vm997, %v989, %v811
  %v1007 = vsel %vm997, %v990, %v814
  %v1008 = vsel %vm997, %v991, %v817
  %v1009 = vsel %vm997, %v992, %v820
  %v1010 = vsel %vm997, %v993, %v823
  %v1011 = vsel %vm997, %v994, %v826
  %v1012 = vsel %vm997, %v995, %v829
  %v1013 = vsel %vm997, %v996, %v832
  %vm1014 = vcmask 48128
  %v1015 = vsel %vm1014, %v998, %v836
  %v1016 = vsel %vm1014, %v999, %v839
  %v1017 = vsel %vm1014, %v1000, %v842
  %v1018 = vsel %vm1014, %v1001, %v845
  %v1019 = vsel %vm1014, %v1002, %v848
  %v1020 = vsel %vm1014, %v1003, %v851
  %v1021 = vsel %vm1014, %v1004, %v854
  %v1022 = vsel %vm1014, %v1005, %v857
  %v1023 = vsel %vm1014, %v1006, %v860
  %v1024 = vsel %vm1014, %v1007, %v863
  %v1025 = vsel %vm1014, %v1008, %v866
  %v1026 = vsel %vm1014, %v1009, %v869
  %v1027 = vsel %vm1014, %v1010, %v872
  %v1028 = vsel %vm1014, %v1011, %v875
  %v1029 = vsel %vm1014, %v1012, %v878
  %v1030 = vsel %vm1014, %v1013, %v881
  %vm1031 = vcmask 56320
  %v1032 = vsel %vm1031, %v1015, %v885
  %v1033 = vsel %vm1031, %v1016, %v888
  %v1034 = vsel %vm1031, %v1017, %v891
  %v1035 = vsel %vm1031, %v1018, %v894
  %v1036 = vsel %vm1031, %v1019, %v897
  %v1037 = vsel %vm1031, %v1020, %v900
  %v1038 = vsel %vm1031, %v1021, %v903
  %v1039 = vsel %vm1031, %v1022, %v906
  %v1040 = vsel %vm1031, %v1023, %v909
  %v1041 = vsel %vm1031, %v1024, %v912
  %v1042 = vsel %vm1031, %v1025, %v915
  %v1043 = vsel %vm1031, %v1026, %v918
  %v1044 = vsel %vm1031, %v1027, %v921
  %v1045 = vsel %vm1031, %v1028, %v924
  %v1046 = vsel %vm1031, %v1029, %v927
  %v1047 = vsel %vm1031, %v1030, %v930
  %vm1048 = vcmask 64512
  %1049 = vst.msk [vmem:[%s5] sm:$0xff] %vm1048, %v1032
  %1050 = vst.msk [vmem:[%s5 + $0x8] sm:$0xff] %vm1048, %v1033
  %1051 = vst.msk [vmem:[%s5 + $0x10] sm:$0xff] %vm1048, %v1034
  %1052 = vst.msk [vmem:[%s5 + $0x18] sm:$0xff] %vm1048, %v1035
  %1053 = vst.msk [vmem:[%s5 + $0x20] sm:$0xff] %vm1048, %v1036
  %1054 = vst.msk [vmem:[%s5 + $0x28] sm:$0xff] %vm1048, %v1037
  %1055 = vst.msk [vmem:[%s5 + $0x30] sm:$0xff] %vm1048, %v1038
  %1056 = vst.msk [vmem:[%s5 + $0x38] sm:$0xff] %vm1048, %v1039
  %1057 = vst.msk [vmem:[%s5 + $0x40] sm:$0xff] %vm1048, %v1040
  %1058 = vst.msk [vmem:[%s5 + $0x48] sm:$0xff] %vm1048, %v1041
  %1059 = vst.msk [vmem:[%s5 + $0x50] sm:$0xff] %vm1048, %v1042
  %1060 = vst.msk [vmem:[%s5 + $0x58] sm:$0xff] %vm1048, %v1043
  %1061 = vst.msk [vmem:[%s5 + $0x60] sm:$0xff] %vm1048, %v1044
  %1062 = vst.msk [vmem:[%s5 + $0x68] sm:$0xff] %vm1048, %v1045
  %1063 = vst.msk [vmem:[%s5 + $0x70] sm:$0xff] %vm1048, %v1046
  %1064 = vst.msk [vmem:[%s5 + $0x78] sm:$0xff] %vm1048, %v1047
  // Predicated region
  $region22: #{tpu_custom_call.1} parent=0 // pred_check
    _
  $region23: #{tpu_custom_call.1} parent=0 // pred_check_branch
    %1066 = sbr.rel (0) target = $region25
  $region24: #{tpu_custom_call.1} parent=0 // pred_region
    _
  $region25: #{tpu_custom_call.1} parent=0 // pred_fallthru
    _
  // Predicated region
  $region26: #{tpu_custom_call.1} parent=0 // pred_check
    _
  $region27: #{tpu_custom_call.1} parent=0 // pred_check_branch
    %1068 = sbr.rel (0) target = $region29
  $region28: #{tpu_custom_call.1} parent=0 // pred_region
    _
  $region29: #{tpu_custom_call.1} parent=0 // pred_fallthru
    _

</llo_original>
